<compile_context>
chip_gen: v7x
topology: tpu7x:2x2x1
jax: 0.10.0
libtpu: 0.0.40
codegen_flags: <defaults>
</compile_context>

<pallas_src>
import functools

import jax
import jax.numpy as jnp
from jax import lax
from jax.experimental import pallas as pl
from jax.experimental.pallas import tpu as pltpu

_MIB = 1024 * 1024


def _round_up(x, m):
    return ((x + m - 1) // m) * m


def _round_down(x, m):
    return (x // m) * m


def _vmem_budget():
    """Returns (vmem_limit_bytes, per-input-block byte cap) per TPU generation."""
    try:
        info = pltpu.get_tpu_info()
        vmem_phys = int(getattr(info, "vmem_capacity_bytes", 64 * _MIB))
    except Exception:
        vmem_phys = 64 * _MIB  # conservative (v7x-safe) fallback
    if vmem_phys <= 64 * _MIB:
        # v7x: 64 MiB per TensorCore, ~3.2 TB/s HBM -> 2*block + scratch << cap.
        return 48 * _MIB, 10 * _MIB
    # v5e / v6e: 128 MiB physical VMEM -> raise scoped limit, bigger blocks.
    return 64 * _MIB, 12 * _MIB


def _pick_ts(S, ts_cap):
    """Reduction-chunk width: always a multiple of 128 lanes.

    Prefer an exact divisor of S (maskless steady state); otherwise use the cap
    (or round S up to 128) and mask the tail chunk inside the kernel.
    """
    if S <= ts_cap:
        return S if S % 128 == 0 else _round_up(S, 128)
    best_div = 0
    if S % 128 == 0:
        t = 128
        while t <= ts_cap:
            if S % t == 0:
                best_div = t
            t += 128
    if best_div >= max(2048, ts_cap // 4):
        return best_div
    return ts_cap  # tail chunk handled via in-kernel lane mask


def _global_avg_pool_kernel(x_ref, o_ref, acc_ref, *, inv_hw, hw, ts, needs_mask):
    """Grid = (row_tiles [parallel], hw_chunks [arbitrary/reduction])."""
    k = pl.program_id(1)

    @pl.when(k == 0)
    def _():
        acc_ref[...] = jnp.zeros_like(acc_ref)

    # Steady state: vld + VALU only.  Static 128-wide ref views (free), cast to
    # f32 AFTER the native-dtype HBM->VMEM DMA, accumulate lane-partials.
    acc = acc_ref[...]
    for j in range(ts // 128):
        xj = x_ref[:, j * 128:(j + 1) * 128].astype(jnp.float32)
        if needs_mask:
            col = k * ts + j * 128 + lax.broadcasted_iota(jnp.int32, xj.shape, 1)
            xj = jnp.where(col < hw, xj, 0.0)
        acc = acc + xj
    acc_ref[...] = acc

    @pl.when(k == pl.num_programs(1) - 1)
    def _():
        # Epilogue only: single cross-lane (XLU) reduce, scale, narrow store.
        total = jnp.sum(acc, axis=-1, keepdims=True)
        o_ref[...] = (total * inv_hw).astype(o_ref.dtype)


def global_avg_pool2d(x):
    """Equivalent of nn.AvgPool2d(kernel_size=x.shape[2:]) on NCHW input."""
    N, C, H, W = x.shape
    R, S = N * C, H * W
    x2 = x.reshape(R, S)  # zero-copy view; reduction happens inside the kernel

    itemsize = jnp.dtype(x.dtype).itemsize
    # Dtype-aware sublane base: f32 -> 8, bf16 -> 16, int8/fp8 -> 32.
    sub_base = max(8, 8 * (4 // itemsize))

    vmem_limit, block_cap = _vmem_budget()

    # Lane-chunk width (multiple of 128), bounded so even one sub_base-row
    # stripe stays within the block cap.
    ts_cap = min(8192, _round_down(block_cap // (sub_base * itemsize), 128))
    ts_cap = max(ts_cap, 128)
    ts = _pick_ts(S, ts_cap)
    needs_mask = (S % ts) != 0
    grid_k = pl.cdiv(S, ts)

    # Row-tile height, budgeted with padded footprints:
    #   input  : 2 (double buffer) * ts * itemsize          per row
    #   output : 2 * 128 (lane-padded (tm, 1)) * itemsize   per row
    #   scratch: 128 * 4 (f32 lane-partial accumulator)     per row
    per_row = 2 * ts * itemsize + 2 * 128 * itemsize + 128 * 4
    budget = vmem_limit - 2 * _MIB  # headroom for Mosaic internal scratch
    tm_budget = _round_down(budget // per_row, sub_base)
    tm_block = _round_down(block_cap // (ts * itemsize), sub_base)
    tm = max(sub_base, min(tm_budget, tm_block))

    if R <= sub_base:
        tm = R  # full-extent row block is always legal
    else:
        tm = min(tm, max(sub_base, _round_down(R, sub_base)))
        # Guarantee >= 2 row tiles so v7x can shard the parallel axis across
        # its 2 TensorCores (negligible cost on single-core v5e/v6e).
        if R >= 2 * sub_base:
            tm = min(tm, max(sub_base, _round_down(R // 2, sub_base)))
    grid_r = pl.cdiv(R, tm)

    kernel = functools.partial(
        _global_avg_pool_kernel,
        inv_hw=1.0 / float(S), hw=S, ts=ts, needs_mask=needs_mask)

    out = pl.pallas_call(
        kernel,
        out_shape=jax.ShapeDtypeStruct((R, 1), x.dtype),
        grid_spec=pltpu.PrefetchScalarGridSpec(
            num_scalar_prefetch=0,
            grid=(grid_r, grid_k),
            in_specs=[pl.BlockSpec((tm, ts), lambda i, k: (i, k))],
            out_specs=pl.BlockSpec((tm, 1), lambda i, k: (i, 0)),
            scratch_shapes=[pltpu.VMEM((tm, 128), jnp.float32)],
        ),
        compiler_params=pltpu.CompilerParams(
            # Independent row tiles -> shard across TCs (v7x megacore); the
            # reduction axis carries the accumulator -> arbitrary, innermost.
            dimension_semantics=("parallel", "arbitrary"),
            vmem_limit_bytes=vmem_limit,
        ),
    )(x2)
    return out.reshape(N, C, 1, 1)


if __name__ == "__main__":
    key = jax.random.PRNGKey(0)

    # Primary (spec-sized) test: N=2, C=4, H=W=16, f32.
    N, C, H, W = 2, 4, 16, 16
    x = jax.random.normal(key, (N, C, H, W), dtype=jnp.float32)
    y = global_avg_pool2d(x)
    jax.block_until_ready(y)
    y_ref = jnp.mean(x, axis=(2, 3), keepdims=True)
    assert y.shape == (N, C, 1, 1), y.shape
    assert jnp.allclose(y, y_ref, atol=1e-5, rtol=1e-5), "mismatch vs reference (f32)"

    # Multi-row-tile grid (R=16 -> 2 parallel row tiles), larger spatial extent.
    x2 = jax.random.normal(jax.random.PRNGKey(1), (2, 8, 64, 64), dtype=jnp.float32)
    y2 = global_avg_pool2d(x2)
    jax.block_until_ready(y2)
    y2_ref = jnp.mean(x2, axis=(2, 3), keepdims=True)
    assert jnp.allclose(y2, y2_ref, atol=1e-5, rtol=1e-5), "mismatch vs reference (tiled)"

    # Non-128-divisible spatial size (7x7) -> masked tail-chunk path.
    x3 = jax.random.normal(jax.random.PRNGKey(2), (2, 4, 7, 7), dtype=jnp.float32)
    y3 = global_avg_pool2d(x3)
    jax.block_until_ready(y3)
    y3_ref = jnp.mean(x3, axis=(2, 3), keepdims=True)
    assert jnp.allclose(y3, y3_ref, atol=1e-5, rtol=1e-5), "mismatch vs reference (masked)"

    # bf16 input -> dtype-aware sublane base (16) and cast-after-DMA path.
    x4 = jax.random.normal(jax.random.PRNGKey(3), (2, 16, 16, 16), dtype=jnp.bfloat16)
    y4 = global_avg_pool2d(x4)
    jax.block_until_ready(y4)
    y4_ref = jnp.mean(x4.astype(jnp.float32), axis=(2, 3), keepdims=True)
    assert jnp.allclose(y4.astype(jnp.float32), y4_ref, atol=1e-2, rtol=1e-2), \
        "mismatch vs reference (bf16)"

    print("KERNEL_OK")
</pallas_src>

<mosaic_0001>
module attributes {stable_mosaic.version = 11 : i64} {
  func.func @_global_avg_pool_kernel(%arg0: i32, %arg1: i32, %arg2: memref<8x256xf32, #tpu.memory_space<vmem>>, %arg3: memref<8x1xf32, #tpu.memory_space<vmem>>, %arg4: memref<8x128xf32, #tpu.memory_space<vmem>>) attributes {dimension_semantics = [#tpu.dimension_semantics<parallel>, #tpu.dimension_semantics<arbitrary>], iteration_bounds = array<i64: 1, 1>, scalar_prefetch = 0 : i64, scratch_operands = 1 : i64, tpu.core_type = #tpu.core_type<tc>, window_params = [{transform_indices = @transform_0, window_bounds = array<i64: 8, 256>}, {transform_indices = @transform_1, window_bounds = array<i64: 8, 1>}]} {
    %c0_i32 = arith.constant 0 : i32
    %0 = arith.cmpi eq, %arg1, %c0_i32 : i32
    %1 = arith.extui %0 : i1 to i32
    %c0_i32_0 = arith.constant 0 : i32
    %2 = arith.cmpi ne, %1, %c0_i32_0 : i32
    scf.if %2 {
      %cst = arith.constant 0.000000e+00 : f32
      %12 = vector.broadcast %cst : f32 to vector<8x128xf32>
      %c0_9 = arith.constant 0 : index
      %c0_10 = arith.constant 0 : index
      %13 = vector.load %arg4[%c0_9, %c0_10] : memref<8x128xf32, #tpu.memory_space<vmem>>, vector<8x128xf32>
      tpu.vector_store %arg4[%c0_9, %c0_10], %12 {strides = array<i32>} : memref<8x128xf32, #tpu.memory_space<vmem>>, vector<8x128xf32>,
    } else {
    }
    %c0 = arith.constant 0 : index
    %c0_1 = arith.constant 0 : index
    %3 = vector.load %arg4[%c0, %c0_1] : memref<8x128xf32, #tpu.memory_space<vmem>>, vector<8x128xf32>
    %c0_2 = arith.constant 0 : index
    %c0_3 = arith.constant 0 : index
    %4 = vector.load %arg2[%c0_2, %c0_3] : memref<8x256xf32, #tpu.memory_space<vmem>>, vector<8x128xf32>
    %5 = arith.addf %3, %4 : vector<8x128xf32>
    %c0_4 = arith.constant 0 : index
    %c128 = arith.constant 128 : index
    %6 = vector.load %arg2[%c0_4, %c128] : memref<8x256xf32, #tpu.memory_space<vmem>>, vector<8x128xf32>
    %7 = arith.addf %5, %6 : vector<8x128xf32>
    %c0_5 = arith.constant 0 : index
    %c0_6 = arith.constant 0 : index
    %8 = vector.load %arg4[%c0_5, %c0_6] : memref<8x128xf32, #tpu.memory_space<vmem>>, vector<8x128xf32>
    tpu.vector_store %arg4[%c0_5, %c0_6], %7 {strides = array<i32>} : memref<8x128xf32, #tpu.memory_space<vmem>>, vector<8x128xf32>,
    %c0_i32_7 = arith.constant 0 : i32
    %9 = arith.cmpi eq, %arg1, %c0_i32_7 : i32
    %10 = arith.extui %9 : i1 to i32
    %c0_i32_8 = arith.constant 0 : i32
    %11 = arith.cmpi ne, %10, %c0_i32_8 : i32
    scf.if %11 {
      %cst = arith.constant dense<0.000000e+00> : vector<8xf32>
      %12 = vector.multi_reduction <add>, %7, %cst [1] : vector<8x128xf32> to vector<8xf32>
      %13 = vector.shape_cast %12 : vector<8xf32> to vector<8x1xf32>
      %cst_9 = arith.constant 3.906250e-03 : f32
      %14 = vector.broadcast %cst_9 : f32 to vector<8x1xf32>
      %15 = arith.mulf %13, %14 : vector<8x1xf32>
      %c0_10 = arith.constant 0 : index
      %c0_11 = arith.constant 0 : index
      %16 = vector.load %arg3[%c0_10, %c0_11] : memref<8x1xf32, #tpu.memory_space<vmem>>, vector<8x1xf32>
      tpu.vector_store %arg3[%c0_10, %c0_11], %15 {strides = array<i32>} : memref<8x1xf32, #tpu.memory_space<vmem>>, vector<8x1xf32>,
    } else {
    }
    return
  }
  func.func @transform_0(%arg0: i32, %arg1: i32) -> (i32, i32) {
    %c0_i32 = arith.constant 0 : i32
    return %arg0, %arg1 : i32, i32
  }
  func.func @transform_1(%arg0: i32, %arg1: i32) -> (i32, i32) {
    %c0_i32 = arith.constant 0 : i32
    %c0_i32_0 = arith.constant 0 : i32
    return %arg0, %c0_i32 : i32, i32
  }
}

</mosaic_0001>

<llo_original>
// kernel: tpu_custom_call.1
$region0: #{tpu_custom_call.1}
  #allocation0 [shape = 'u32[]', space=smem, size = 0x4, offset = 0x4, fixed_abs, tag = 'smem constant byte address 0x4 - core index']
  #allocation1 [shape = 'u32[144,128]{1,0:T(1,128)}', space=vmem, size = 0x12000, scoped, tag = 'internal scratch']
  #allocation2 [shape = 'f32[8,128]{1,0:T(8,128)}', space=vmem, size = 0x1000, scoped, tag = 'scratch operand']
  %s0 = inlined_call_operand.hbm [shape: f32[8,256], index: 0, kind: input, shape index: {}]
  %s1 = inlined_call_operand.vmem [shape: f32[8,1], index: 1, kind: output, shape index: {}]
  %s2 = sld [smem:[#allocation0]]
  $region26: #{tpu_custom_call.1} parent=0
    _
  %s4 = ssub.s32 1, %s2
  %s5 = scalar_select 0, %s4, %s2
  $region1: #{tpu_custom_call.1} parent=0
    #allocation3 [shape = 'u8[8192]{0}', space=vmem, size = 0x2000, scoped, tag = 'input window, operand 0, single buffered']
    #allocation4 [shape = 's32[1]{0}', space=sflag, size = 0x4, scoped, tag = 'scoped memory for tpu_custom_call.1']
    %6 = vsyncpa [#allocation4], 0
    // Predicated region
    $region2: #{tpu_custom_call.1} parent=1 // pred_check
      _
    $region3: #{tpu_custom_call.1} parent=1 // pred_check_branch
      %8 = sbr.rel (0) target = $region5
    $region4: #{tpu_custom_call.1} parent=1 // pred_region
      %s10 = ssub.s32 256, 256
      %11 = vsyncadd [#allocation4], %s10
      %s13 = sshll.u32 [#allocation3], 4
      %s14 = int_to_ptr.vmem [resolvable:$true] %s13
      %16 = dma.hbm_to_vmem [thread:$0]  %s0, 256, %s14, [#allocation4]
    $region5: #{tpu_custom_call.1} parent=1 // pred_fallthru
      _
    // Predicated region
    $region6: #{tpu_custom_call.1} parent=1 // pred_check
      _
    $region7: #{tpu_custom_call.1} parent=1 // pred_check_branch
      %18 = sbr.rel (0) target = $region9
    $region8: #{tpu_custom_call.1} parent=1 // pred_region
      %19 = dma.done [#allocation4], 256
    $region9: #{tpu_custom_call.1} parent=1 // pred_fallthru
      _
    %p20 = scmp.eq.s32.totalorder 0, 0
    // Predicated region
    $region10: #{tpu_custom_call.1} parent=1 // pred_check
      %p21 = pneg %p20
    $region11: #{tpu_custom_call.1} parent=1 // pred_check_branch
      %23 = sbr.rel (%p21) target = $region13
    $region12: #{tpu_custom_call.1} parent=1 // pred_region
      %24 = vst [vmem:[#allocation2] sm:$0xff] 0.0
    $region13: #{tpu_custom_call.1} parent=1 // pred_fallthru
      _
    %v25 = vld [vmem:[#allocation2] sm:$0xff]
    %v26 = vld [vmem:[#allocation3] sm:$0xff]
    %v27 = vadd.f32 %v25, %v26
    %v28 = vld [vmem:[#allocation3 + $0x8] sm:$0xff]
    %v29 = vadd.f32 %v27, %v28
    %30 = vst [vmem:[#allocation2] sm:$0xff] %v29
    // Predicated region
    $region14: #{tpu_custom_call.1} parent=1 // pred_check
      %p31 = pneg %p20
    $region15: #{tpu_custom_call.1} parent=1 // pred_check_branch
      %33 = sbr.rel (%p31) target = $region17
    $region16: #{tpu_custom_call.1} parent=1 // pred_region
      %34 = vadd.xlane.f32.xlu0 %v29
      %v35 = vpop.xlane.xlu0 %34
      %v36 = vmul.f32 %v35, 0.00390625
      %vm37 = vcmask 7168
      %38 = vst.msk [vmem:[%s1] sm:$0xff] %vm37, %v36
    $region17: #{tpu_custom_call.1} parent=1 // pred_fallthru
      _
    // Predicated region
    $region18: #{tpu_custom_call.1} parent=1 // pred_check
      _
    $region19: #{tpu_custom_call.1} parent=1 // pred_check_branch
      %40 = sbr.rel (0) target = $region21
    $region20: #{tpu_custom_call.1} parent=1 // pred_region
      _
    $region21: #{tpu_custom_call.1} parent=1 // pred_fallthru
      _
    // Predicated region
    $region22: #{tpu_custom_call.1} parent=1 // pred_check
      _
    $region23: #{tpu_custom_call.1} parent=1 // pred_check_branch
      %42 = sbr.rel (0) target = $region25
    $region24: #{tpu_custom_call.1} parent=1 // pred_region
      _
    $region25: #{tpu_custom_call.1} parent=1 // pred_fallthru
      _
    %43 = vsyncpa [#allocation4], 1

</llo_original>
